<compile_context>
chip_gen: v5e
topology: v5e:2x2
jax: 0.10.0
libtpu: 0.0.40
codegen_flags: <defaults>
</compile_context>

<pallas_src>
import jax
import jax.numpy as jnp
from jax import lax
from jax.experimental import pallas as pl
from jax.experimental.pallas import tpu as pltpu

_LANE = 128


def _round_up(n: int, m: int) -> int:
    return ((n + m - 1) // m) * m


def _pad_axis(a, axis, new_size):
    """Zero-pad `a` along `axis` up to `new_size` (no-op if already there)."""
    if a.shape[axis] == new_size:
        return a
    widths = [(0, 0)] * a.ndim
    widths[axis] = (0, new_size - a.shape[axis])
    return jnp.pad(a, widths)


def _pwff_kernel(x_ref, w1_ref, w2_ref, b_ref, o_ref):
    """out = relu(x @ W1 + b1) @ W2 + b2 on one (rows, hid) slab."""
    pf = w1_ref.shape[1]
    # Inputs feed the MXU directly (no VPU-wide upcast); accumulate in f32.
    h = jnp.dot(x_ref[...], w1_ref[...], preferred_element_type=jnp.float32)
    h = jnp.maximum(h + b_ref[:, :pf], 0.0)          # ReLU(fc_1)
    # TODO(synk): nn.Dropout omitted — identity in the eval-mode forward pass.
    y = jnp.dot(h, w2_ref[...], preferred_element_type=jnp.float32)
    o_ref[...] = (y + b_ref[:, pf:]).astype(o_ref.dtype)


def _auto_row_block(n_rows, hid, pf_p, hid_p, itemsize):
    """None => whole-array residency (no grid); else a VMEM-sized row tile."""
    if n_rows <= 1024:
        return None
    try:
        vmem_bytes = pltpu.get_tpu_info().vmem_capacity_bytes
    except Exception:
        vmem_bytes = 64 * 1024 * 1024              # conservative v7x floor
    budget = vmem_bytes // 4                       # headroom: weights + dbl-buffering
    weight_bytes = itemsize * (hid * pf_p + pf_p * hid_p + pf_p + hid_p)
    # Per row: double-buffered x/out tiles plus f32 intermediates (h, y).
    per_row = 2 * itemsize * (hid + hid_p) + 4 * (pf_p + hid_p)
    rows = (budget - weight_bytes) // max(per_row, 1)
    rows = int(max(256, min(rows, 1024)))
    return (rows // 256) * 256


def position_wise_ff(x, w1, b1, w2, b2, *, row_block=None):
    """PositionWiseFeedforward forward: (B, L, hid) -> (B, L, hid).

    Weights stored (in, out): w1 (hid, pf), w2 (pf, hid); biases (1, pf),
    (1, hid) — i.e. the Conv1d(k=1) kernels transposed so y = x @ W + b.
    """
    B, L, hid = x.shape
    pf = w1.shape[1]
    N = B * L

    # Lane-dense feature dims (no-op when hid/pf are already multiples of 128).
    pf_p = _round_up(pf, _LANE)
    hid_p = _round_up(hid, _LANE)
    w1p = _pad_axis(w1, 1, pf_p)                              # (hid, pf_p)
    w2p = _pad_axis(_pad_axis(w2, 0, pf_p), 1, hid_p)         # (pf_p, hid_p)
    bp = jnp.concatenate(                                     # (1, pf_p + hid_p)
        [_pad_axis(b1, 1, pf_p), _pad_axis(b2, 1, hid_p)], axis=1)

    x2 = x.reshape(N, hid)        # flatten batch*seq: dense MXU rows, one slab
    itemsize = jnp.dtype(x.dtype).itemsize

    cost = pl.CostEstimate(
        flops=2 * N * (hid * pf_p + pf_p * hid_p),
        transcendentals=0,
        bytes_accessed=int(itemsize * (N * hid + N * hid_p)
                           + w1p.size * jnp.dtype(w1p.dtype).itemsize
                           + w2p.size * jnp.dtype(w2p.dtype).itemsize
                           + bp.size * jnp.dtype(bp.dtype).itemsize),
    )
    out_shape = jax.ShapeDtypeStruct((N, hid_p), x.dtype)

    if row_block is None:
        row_block = _auto_row_block(N, hid, pf_p, hid_p, itemsize)

    if row_block is None or row_block >= N:
        # Small problem: everything resident in VMEM, no grid, no pipeline.
        vmem = pltpu.MemorySpace.VMEM
        out2 = pl.pallas_call(
            _pwff_kernel,
            out_shape=out_shape,
            in_specs=[pl.BlockSpec(memory_space=vmem) for _ in range(4)],
            out_specs=pl.BlockSpec(memory_space=vmem),
            cost_estimate=cost,
        )(x2, w1p, w2p, bp)
    else:
        # Realistic N: row-tiled grid; tiles are independent => "parallel" so
        # v7x megacore can shard them across its two TensorCores.
        out2 = pl.pallas_call(
            _pwff_kernel,
            out_shape=out_shape,
            grid=(pl.cdiv(N, row_block),),
            in_specs=[
                pl.BlockSpec((row_block, hid), lambda i: (i, 0)),      # x rows
                pl.BlockSpec((hid, pf_p), lambda i: (0, 0)),           # W1
                pl.BlockSpec((pf_p, hid_p), lambda i: (0, 0)),         # W2
                pl.BlockSpec((1, pf_p + hid_p), lambda i: (0, 0)),     # b1|b2
            ],
            out_specs=pl.BlockSpec((row_block, hid_p), lambda i: (i, 0)),
            compiler_params=pltpu.CompilerParams(
                dimension_semantics=("parallel",)),
            cost_estimate=cost,
        )(x2, w1p, w2p, bp)

    if hid_p != hid:
        out2 = out2[:, :hid]
    return out2.reshape(B, L, hid)


def reference(x, w1, b1, w2, b2):
    """Pure-JAX reference mirroring the PyTorch forward (for validation)."""
    h = jax.nn.relu(jnp.dot(x, w1, precision=lax.Precision.HIGHEST) + b1)
    return jnp.dot(h, w2, precision=lax.Precision.HIGHEST) + b2


if __name__ == "__main__":
    # Shapes implied by the module: (batch, seq_len, hid_dim); pf_dim inner.
    B, L, HID, PF = 2, 8, 32, 64   # hid_dim=32, pf_dim=64

    key = jax.random.PRNGKey(0)
    kx, k1, kb1, k2, kb2 = jax.random.split(key, 5)

    x = jax.random.normal(kx, (B, L, HID), jnp.float32)
    # Conv1d(k=1)-equivalent params stored (in, out) so y = x @ W + b.
    w1 = jax.random.normal(k1, (HID, PF), jnp.float32) * (1.0 / HID ** 0.5)
    b1 = jax.random.normal(kb1, (1, PF), jnp.float32) * 0.1
    w2 = jax.random.normal(k2, (PF, HID), jnp.float32) * (1.0 / PF ** 0.5)
    b2 = jax.random.normal(kb2, (1, HID), jnp.float32) * 0.1

    out = position_wise_ff(x, w1, b1, w2, b2)          # no-grid, VMEM-resident path
    jax.block_until_ready(out)
    ref = reference(x, w1, b1, w2, b2)
    assert out.shape == (B, L, HID)
    assert out.dtype == x.dtype
    assert jnp.allclose(out, ref, atol=1e-5, rtol=1e-5)

    # Also exercise the row-tiled "parallel" grid path at a transformer-ish N.
    B2, L2, HID2, PF2 = 4, 512, 128, 512               # N = 2048 rows
    kx2, k12, kb12, k22, kb22 = jax.random.split(jax.random.PRNGKey(1), 5)
    x_b = jax.random.normal(kx2, (B2, L2, HID2), jnp.float32)
    w1_b = jax.random.normal(k12, (HID2, PF2), jnp.float32) * (1.0 / HID2 ** 0.5)
    b1_b = jax.random.normal(kb12, (1, PF2), jnp.float32) * 0.1
    w2_b = jax.random.normal(k22, (PF2, HID2), jnp.float32) * (1.0 / PF2 ** 0.5)
    b2_b = jax.random.normal(kb22, (1, HID2), jnp.float32) * 0.1

    out_b = position_wise_ff(x_b, w1_b, b1_b, w2_b, b2_b)
    jax.block_until_ready(out_b)
    ref_b = reference(x_b, w1_b, b1_b, w2_b, b2_b)
    assert out_b.shape == (B2, L2, HID2)
    assert jnp.allclose(out_b, ref_b, atol=1e-4, rtol=1e-4)

    print("KERNEL_OK")
</pallas_src>

<mosaic_0001>
module attributes {stable_mosaic.version = 11 : i64} {
  func.func @_pwff_kernel(%arg0: memref<16x32xf32, #tpu.memory_space<vmem>>, %arg1: memref<32x128xf32, #tpu.memory_space<vmem>>, %arg2: memref<128x128xf32, #tpu.memory_space<vmem>>, %arg3: memref<1x256xf32, #tpu.memory_space<vmem>>, %arg4: memref<16x128xf32, #tpu.memory_space<vmem>>) attributes {dimension_semantics = [], scalar_prefetch = 0 : i64, scratch_operands = 0 : i64, tpu.core_type = #tpu.core_type<tc>} {
    %c0 = arith.constant 0 : index
    %c0_0 = arith.constant 0 : index
    %0 = vector.load %arg0[%c0, %c0_0] : memref<16x32xf32, #tpu.memory_space<vmem>>, vector<16x32xf32>
    %c0_1 = arith.constant 0 : index
    %c0_2 = arith.constant 0 : index
    %1 = vector.load %arg1[%c0_1, %c0_2] : memref<32x128xf32, #tpu.memory_space<vmem>>, vector<32x128xf32>
    %cst = arith.constant dense<0.000000e+00> : vector<16x128xf32>
    %2 = tpu.matmul %0, %1, %cst {dimension_numbers = #tpu.dot_dimension_numbers<[1], [0], [0], [1], [0, 0, 1, 1], [], []>} : vector<16x32xf32>, vector<32x128xf32>, vector<16x128xf32> -> vector<16x128xf32>
    %c0_3 = arith.constant 0 : index
    %c0_4 = arith.constant 0 : index
    %3 = vector.load %arg3[%c0_3, %c0_4] : memref<1x256xf32, #tpu.memory_space<vmem>>, vector<1x128xf32>
    %4 = vector.broadcast %3 : vector<1x128xf32> to vector<16x128xf32>
    %5 = arith.addf %2, %4 : vector<16x128xf32>
    %cst_5 = arith.constant 0.000000e+00 : f32
    %6 = vector.broadcast %cst_5 : f32 to vector<16x128xf32>
    %7 = arith.maximumf %5, %6 : vector<16x128xf32>
    %c0_6 = arith.constant 0 : index
    %c0_7 = arith.constant 0 : index
    %8 = vector.load %arg2[%c0_6, %c0_7] : memref<128x128xf32, #tpu.memory_space<vmem>>, vector<128x128xf32>
    %cst_8 = arith.constant dense<0.000000e+00> : vector<16x128xf32>
    %9 = tpu.matmul %7, %8, %cst_8 {dimension_numbers = #tpu.dot_dimension_numbers<[1], [0], [0], [1], [0, 0, 1, 1], [], []>} : vector<16x128xf32>, vector<128x128xf32>, vector<16x128xf32> -> vector<16x128xf32>
    %c0_9 = arith.constant 0 : index
    %c128 = arith.constant 128 : index
    %10 = vector.load %arg3[%c0_9, %c128] : memref<1x256xf32, #tpu.memory_space<vmem>>, vector<1x128xf32>
    %11 = vector.broadcast %10 : vector<1x128xf32> to vector<16x128xf32>
    %12 = arith.addf %9, %11 : vector<16x128xf32>
    %c0_10 = arith.constant 0 : index
    %c0_11 = arith.constant 0 : index
    %13 = vector.load %arg4[%c0_10, %c0_11] : memref<16x128xf32, #tpu.memory_space<vmem>>, vector<16x128xf32>
    tpu.vector_store %arg4[%c0_10, %c0_11], %12 {strides = array<i32>} : memref<16x128xf32, #tpu.memory_space<vmem>>, vector<16x128xf32>,
    return
  }
}

</mosaic_0001>

<llo_original>
// kernel: tpu_custom_call.1
$region0: #{tpu_custom_call.1}
  #allocation0 [shape = 'u32[]', space=smem, size = 0x4, offset = 0x4, fixed_abs, tag = 'smem constant byte address 0x4 - core index']
  #allocation1 [shape = 'u32[72,128]{1,0:T(1,128)}', space=vmem, size = 0x9000, scoped, tag = 'internal scratch']
  %s0 = inlined_call_operand.hbm [shape: f32[16,32], index: 0, kind: input, shape index: {}]
  %s1 = inlined_call_operand.hbm [shape: f32[32,128], index: 1, kind: input, shape index: {}]
  %s2 = inlined_call_operand.hbm [shape: f32[128,128], index: 2, kind: input, shape index: {}]
  %s3 = inlined_call_operand.vmem [shape: f32[1,256], index: 3, kind: input, shape index: {}]
  %s4 = inlined_call_operand.hbm [shape: f32[16,128], index: 4, kind: output, shape index: {}]
  %s5 = sld [smem:[#allocation0]]
  $region38: #{tpu_custom_call.1} parent=0
    _
  %s7 = ssub.s32 1, %s5
  %s8 = scalar_select 0, %s7, %s5
  $region1: #{tpu_custom_call.1} parent=0
    #allocation2 [shape = 'u8[8192]{0}', space=vmem, size = 0x2000, scoped, tag = 'input window, operand 0, single buffered']
    #allocation3 [shape = 's32[1]{0}', space=sflag, size = 0x4, scoped, tag = 'scoped memory for tpu_custom_call.1']
    #allocation4 [shape = 's32[1]{0}', space=sflag, size = 0x4, scoped, tag = 'scoped memory for tpu_custom_call.1']
    #allocation5 [shape = 'u8[16384]{0}', space=vmem, size = 0x4000, scoped, tag = 'input window, operand 1, single buffered']
    #allocation6 [shape = 's32[1]{0}', space=sflag, size = 0x4, scoped, tag = 'scoped memory for tpu_custom_call.1']
    #allocation7 [shape = 'u8[65536]{0}', space=vmem, size = 0x10000, scoped, tag = 'input window, operand 2, single buffered']
    #allocation8 [shape = 'u8[8192]{0}', space=vmem, size = 0x2000, scoped, tag = 'output window, operand 0, single buffered']
    %9 = vsyncpa [#allocation3], 0
    %10 = vsyncpa [#allocation6], 0
    %11 = vsyncpa [#allocation4], 0
    // Predicated region
    $region2: #{tpu_custom_call.1} parent=1 // pred_check
      _
    $region3: #{tpu_custom_call.1} parent=1 // pred_check_branch
      %13 = sbr.rel (0) target = $region5
    $region4: #{tpu_custom_call.1} parent=1 // pred_region
      %15 = vsyncadd [#allocation3], 0
      %s16 = sshll.u32 %s0, 4
      %s17 = int_to_ptr.hbm [resolvable:$true] %s16
      %s18 = sshll.u32 [#allocation2], 4
      %s19 = int_to_ptr.vmem [resolvable:$true] %s18
      %24 = dma.hbm_to_vmem [thread:$0]  %s17, 256, %s19, [#allocation3], 128, 128, 8
    $region5: #{tpu_custom_call.1} parent=1 // pred_fallthru
      _
    // Predicated region
    $region6: #{tpu_custom_call.1} parent=1 // pred_check
      _
    $region7: #{tpu_custom_call.1} parent=1 // pred_check_branch
      %26 = sbr.rel (0) target = $region9
    $region8: #{tpu_custom_call.1} parent=1 // pred_region
      %28 = vsyncadd [#allocation6], 0
      %s29 = sshll.u32 %s1, 4
      %s30 = int_to_ptr.hbm [resolvable:$true] %s29
      %s31 = sshll.u32 [#allocation5], 4
      %s32 = int_to_ptr.vmem [resolvable:$true] %s31
      %37 = dma.hbm_to_vmem [thread:$0]  %s30, 512, %s32, [#allocation6], 128, 128, 8
    $region9: #{tpu_custom_call.1} parent=1 // pred_fallthru
      _
    // Predicated region
    $region10: #{tpu_custom_call.1} parent=1 // pred_check
      _
    $region11: #{tpu_custom_call.1} parent=1 // pred_check_branch
      %39 = sbr.rel (0) target = $region13
    $region12: #{tpu_custom_call.1} parent=1 // pred_region
      %41 = vsyncadd [#allocation6], 0
      %s42 = sshll.u32 %s2, 4
      %s43 = int_to_ptr.hbm [resolvable:$true] %s42
      %s44 = sshll.u32 [#allocation7], 4
      %s45 = int_to_ptr.vmem [resolvable:$true] %s44
      %50 = dma.hbm_to_vmem [thread:$0]  %s43, 2048, %s45, [#allocation6], 128, 128, 8
    $region13: #{tpu_custom_call.1} parent=1 // pred_fallthru
      _
    // Predicated region
    $region14: #{tpu_custom_call.1} parent=1 // pred_check
      _
    $region15: #{tpu_custom_call.1} parent=1 // pred_check_branch
      %52 = sbr.rel (0) target = $region17
    $region16: #{tpu_custom_call.1} parent=1 // pred_region
      _
    $region17: #{tpu_custom_call.1} parent=1 // pred_fallthru
      _
    // Predicated region
    $region18: #{tpu_custom_call.1} parent=1 // pred_check
      _
    $region19: #{tpu_custom_call.1} parent=1 // pred_check_branch
      %54 = sbr.rel (0) target = $region21
    $region20: #{tpu_custom_call.1} parent=1 // pred_region
      %56 = dma.done [#allocation3], 256
    $region21: #{tpu_custom_call.1} parent=1 // pred_fallthru
      _
    // Predicated region
    $region22: #{tpu_custom_call.1} parent=1 // pred_check
      _
    $region23: #{tpu_custom_call.1} parent=1 // pred_check_branch
      %58 = sbr.rel (0) target = $region25
    $region24: #{tpu_custom_call.1} parent=1 // pred_region
      %60 = dma.done [#allocation6], 512
    $region25: #{tpu_custom_call.1} parent=1 // pred_fallthru
      _
    // Predicated region
    $region26: #{tpu_custom_call.1} parent=1 // pred_check
      _
    $region27: #{tpu_custom_call.1} parent=1 // pred_check_branch
      %62 = sbr.rel (0) target = $region29
    $region28: #{tpu_custom_call.1} parent=1 // pred_region
      %64 = dma.done [#allocation6], 2048
    $region29: #{tpu_custom_call.1} parent=1 // pred_fallthru
      _
    %v65 = vld [vmem:[#allocation2] sm:$0xff]
    %v66 = vld [vmem:[#allocation2 + $0x8] sm:$0xff]
    %v67 = vld [vmem:[#allocation5] sm:$0xff]
    %v68 = vld [vmem:[#allocation5 + $0x8] sm:$0xff]
    %v69 = vld [vmem:[#allocation5 + $0x10] sm:$0xff]
    %v70 = vld [vmem:[#allocation5 + $0x18] sm:$0xff]
    %v71 = vld [vmem:[%s3] sm:$0x1]
    %v73 = vperm.slane %v71, 0
    %vm75 = vcmask 261120
    %v77 = vsel %vm75, %v65, 0
    %v80 = vsel %vm75, %v66, 0
    %82 = vmatpush.msra.mxu0 0.0
    %83 = vmatpush.msra.mxu0 0.0
    %84 = vmatpush.msra.mxu0 0.0
    %85 = vmatpush.msra.mxu0 0.0
    %86 = vmatpush.msra.mxu0 0.0
    %87 = vmatpush.msra.mxu0 0.0
    %88 = vmatpush.msra.mxu0 0.0
    %89 = vmatpush.msra.mxu0 0.0
    %90 = vmatpush.msra.mxu0 0.0
    %91 = vmatpush.msra.mxu0 0.0
    %92 = vmatpush.msra.mxu0 0.0
    %93 = vmatpush.msra.mxu0 0.0
    %94 = vmatpush.msra.mxu0 %v70
    %95 = vmatpush.msra.mxu0 %v69
    %96 = vmatpush.msra.mxu0 %v68
    %97 = vmatpush.msra.mxu0 %v67
    %98 = vmatmul.f32.gmra.mxu0 %v77
    %v99 = vpop.f32.mrf.mxu0
    %v100 = vadd.f32 %v73, %v99
    %101 = vmatmul.f32.gmra.mxu0 %v80
    %v102 = vpop.f32.mrf.mxu0
    %v103 = vadd.f32 %v73, %v102
    %104 = vdwg.mxu0
    %v105 = vmax.f32 %v100, 0.0
    %v106 = vmax.f32 %v103, 0.0
    %v107 = vld [vmem:[#allocation7] sm:$0xff]
    %v108 = vld [vmem:[#allocation7 + $0x8] sm:$0xff]
    %v109 = vld [vmem:[#allocation7 + $0x10] sm:$0xff]
    %v110 = vld [vmem:[#allocation7 + $0x18] sm:$0xff]
    %v111 = vld [vmem:[#allocation7 + $0x20] sm:$0xff]
    %v112 = vld [vmem:[#allocation7 + $0x28] sm:$0xff]
    %v113 = vld [vmem:[#allocation7 + $0x30] sm:$0xff]
    %v114 = vld [vmem:[#allocation7 + $0x38] sm:$0xff]
    %v115 = vld [vmem:[#allocation7 + $0x40] sm:$0xff]
    %v116 = vld [vmem:[#allocation7 + $0x48] sm:$0xff]
    %v117 = vld [vmem:[#allocation7 + $0x50] sm:$0xff]
    %v118 = vld [vmem:[#allocation7 + $0x58] sm:$0xff]
    %v119 = vld [vmem:[#allocation7 + $0x60] sm:$0xff]
    %v120 = vld [vmem:[#allocation7 + $0x68] sm:$0xff]
    %v121 = vld [vmem:[#allocation7 + $0x70] sm:$0xff]
    %v122 = vld [vmem:[#allocation7 + $0x78] sm:$0xff]
    %v123 = vld [vmem:[%s3 + $0x1] sm:$0x1]
    %v125 = vperm.slane %v123, 0
    %127 = vmatpush.msra.mxu0 %v122
    %128 = vmatpush.msra.mxu0 %v121
    %129 = vmatpush.msra.mxu0 %v120
    %130 = vmatpush.msra.mxu0 %v119
    %131 = vmatpush.msra.mxu0 %v118
    %132 = vmatpush.msra.mxu0 %v117
    %133 = vmatpush.msra.mxu0 %v116
    %134 = vmatpush.msra.mxu0 %v115
    %135 = vmatpush.msra.mxu0 %v114
    %136 = vmatpush.msra.mxu0 %v113
    %137 = vmatpush.msra.mxu0 %v112
    %138 = vmatpush.msra.mxu0 %v111
    %139 = vmatpush.msra.mxu0 %v110
    %140 = vmatpush.msra.mxu0 %v109
    %141 = vmatpush.msra.mxu0 %v108
    %142 = vmatpush.msra.mxu0 %v107
    %143 = vmatmul.f32.gmra.mxu0 %v105
    %v144 = vpop.f32.mrf.mxu0
    %v145 = vadd.f32 %v125, %v144
    %146 = vmatmul.f32.gmra.mxu0 %v106
    %v147 = vpop.f32.mrf.mxu0
    %v148 = vadd.f32 %v125, %v147
    %149 = vdwg.mxu0
    %150 = vst [vmem:[#allocation8] sm:$0xff] %v145
    %151 = vst [vmem:[#allocation8 + $0x8] sm:$0xff] %v148
    // Predicated region
    $region30: #{tpu_custom_call.1} parent=1 // pred_check
      _
    $region31: #{tpu_custom_call.1} parent=1 // pred_check_branch
      %153 = sbr.rel (0) target = $region33
    $region32: #{tpu_custom_call.1} parent=1 // pred_region
      %155 = vsyncadd [#allocation4], 0
      %s156 = sshll.u32 [#allocation8], 4
      %s157 = int_to_ptr.vmem [resolvable:$true] %s156
      %s158 = sshll.u32 %s4, 4
      %s159 = int_to_ptr.hbm [resolvable:$true] %s158
      %164 = dma.vmem_to_hbm [thread:$0]  %s157, 256, %s159, [#allocation4], 128, 128, 8
    $region33: #{tpu_custom_call.1} parent=1 // pred_fallthru
      _
    // Predicated region
    $region34: #{tpu_custom_call.1} parent=1 // pred_check
      _
    $region35: #{tpu_custom_call.1} parent=1 // pred_check_branch
      %166 = sbr.rel (0) target = $region37
    $region36: #{tpu_custom_call.1} parent=1 // pred_region
      %168 = dma.done [#allocation4], 256
    $region37: #{tpu_custom_call.1} parent=1 // pred_fallthru
      _
    %169 = vsyncpa [#allocation3], 1
    %170 = vsyncpa [#allocation6], 1
    %171 = vsyncpa [#allocation4], 1

</llo_original>
